<compile_context>
chip_gen: v7x
topology: tpu7x:2x2x1
jax: 0.10.0
libtpu: 0.0.40
codegen_flags: <defaults>
</compile_context>

<pallas_src>
import functools

import jax
import jax.numpy as jnp
from jax.experimental import pallas as pl
from jax.experimental.pallas import tpu as pltpu


# --------------------------------------------------------------------------
# Kernels
# --------------------------------------------------------------------------
def _rf_fused_kernel(x_ref, wt_ref, o_ref):
    """Whole-K step: o = relu(x @ w), ReLU fused into the output store.

    x stays in its native dtype in HBM and is cast to the frozen weight's
    compute dtype here, right before the MXU (avoids an HBM pre-cast pass).
    """
    x = x_ref[...]
    w = wt_ref[...]
    if x.dtype != w.dtype:
        x = x.astype(w.dtype)
    acc = jnp.dot(x, w, preferred_element_type=jnp.float32)
    o_ref[...] = jnp.maximum(acc, 0.0).astype(o_ref.dtype)


def _rf_ktiled_kernel(x_ref, wt_ref, o_ref, acc_ref):
    """K-tiled fallback: accumulate in a VMEM f32 scratch; write out_dtype once.

    The output BlockSpec is independent of the k axis, so the block is only
    written back to HBM after the last reduction step (ReLU + cast fused).
    """
    k = pl.program_id(2)

    @pl.when(k == 0)
    def _():
        acc_ref[...] = jnp.zeros_like(acc_ref)

    x = x_ref[...]
    w = wt_ref[...]
    if x.dtype != w.dtype:
        x = x.astype(w.dtype)
    acc_ref[...] += jnp.dot(x, w, preferred_element_type=jnp.float32)

    @pl.when(k == pl.num_programs(2) - 1)
    def _():
        o_ref[...] = jnp.maximum(acc_ref[...], 0.0).astype(o_ref.dtype)


# --------------------------------------------------------------------------
# Helpers
# --------------------------------------------------------------------------
def _round_up(v, m):
    return (v + m - 1) // m * m


def _cdiv(a, b):
    return (a + b - 1) // b


def _balanced_tile(dim, cap, align):
    """Tile <= ~cap (multiple of `align`) chosen so padding waste is minimal
    (e.g. M=260, cap=256 -> tile=136, pad 12 rows instead of 252)."""
    dim_a = _round_up(max(int(dim), 1), align)
    ntiles = _cdiv(dim_a, cap)
    return _round_up(_cdiv(dim_a, ntiles), align)


def _largest_divisor_tile(dim, cap, unit=128):
    """Largest multiple of `unit` that divides `dim` (itself a multiple of
    `unit`) and does not exceed `cap` (at least `unit`).  Avoids re-padding
    the pre-padded weight along N / K."""
    q = dim // unit
    cap_q = max(1, cap // unit)
    best = 1
    d = 1
    while d * d <= q:
        if q % d == 0:
            for c in (d, q // d):
                if c <= cap_q and c > best:
                    best = c
        d += 1
    return best * unit


def _chip_config():
    """Generation-aware VMEM budget / tile caps.
    v5e & v6e: 128 MiB VMEM; v7x: 64 MiB per TensorCore (conservative default)."""
    try:
        vmem_cap = int(pltpu.get_tpu_info().vmem_capacity_bytes)
    except Exception:  # no query available -> assume the smallest (v7x) budget
        vmem_cap = 64 * 2**20
    big = vmem_cap >= 100 * 2**20
    mib = 2**20
    return {
        "vmem_ceiling": (96 if big else 48) * mib,
        "vmem_floor": 32 * mib,
        "tm_cap": 512 if big else 256,
        "tn_cap_f32": 2048 if big else 1024,
        "tn_cap_16b": 4096 if big else 2048,
        "tk_cap_f32": 1024 if big else 512,
        "tk_cap_16b": 2048 if big else 1024,
        "w_resident": (16 if big else 8) * mib,
        "x_resident": (8 if big else 4) * mib,
    }


def _vmem_limit(need_bytes, cfg):
    return int(
        min(cfg["vmem_ceiling"], max(cfg["vmem_floor"], need_bytes + 8 * 2**20))
    )


# --------------------------------------------------------------------------
# Frozen-weight init / one-time prep (hoisted out of the forward hot path)
# --------------------------------------------------------------------------
def init_random_features_weight(key, input_shape, random_feature_size,
                                dtype=jnp.float32):
    """kaiming_normal_(mode='fan_out', nonlinearity='relu') for the frozen
    [random_feature_size, input_shape] Linear weight; returned transposed to
    [K, N] = [input_shape, random_feature_size].  std = sqrt(2 / fan_out)."""
    std = (2.0 / random_feature_size) ** 0.5
    w = std * jax.random.normal(
        key, (random_feature_size, input_shape), dtype=jnp.float32
    )
    return w.T.astype(dtype)  # [K, N]


def prepare_random_features_weight(w_t, compute_dtype=None):
    """ONE-TIME prep (the weight is frozen): cast to the compute dtype and
    zero-pad to (round_up(K,128), round_up(N,128)) so no per-call weight
    cast/pad pass is needed on the forward hot path."""
    K, N = w_t.shape
    if compute_dtype is None:
        compute_dtype = w_t.dtype
    Kp, Np = _round_up(K, 128), _round_up(N, 128)
    wp = w_t.astype(compute_dtype)
    if (Kp, Np) != (K, N):
        wp = jnp.pad(wp, ((0, Kp - K), (0, Np - N)))
    return wp


# --------------------------------------------------------------------------
# Forward wrapper
# --------------------------------------------------------------------------
@functools.partial(jax.jit, static_argnames=("n_out", "out_dtype", "tk"))
def random_features(x, w_prep, *, n_out=None, out_dtype=None, tk=None):
    """y = relu(x @ w_prep)[:, :n_out].

    x:      [M, K] activations (kept in HBM in their native dtype).
    w_prep: [Kp, Np] frozen weight from prepare_random_features_weight();
            its dtype is the MXU compute dtype, padded rows/cols are zero.
    n_out:  true output width (defaults to w_prep.shape[1]).
    tk:     optional reduction tile (forces the k-tiled path).
    """
    M, K = x.shape
    Kw, Nw = w_prep.shape

    # Robustness: if the caller passed an unprepared weight, pad it here
    # (slow path -- prefer prepare_random_features_weight at init time).
    if Kw % 128 or Nw % 128:
        Kp_, Np_ = _round_up(Kw, 128), _round_up(Nw, 128)
        w_prep = jnp.pad(w_prep, ((0, Kp_ - Kw), (0, Np_ - Nw)))
        Kw, Nw = Kp_, Np_

    N = Nw if n_out is None else int(n_out)
    assert K <= Kw and N <= Nw, "x / n_out incompatible with prepared weight"

    out_dtype = jnp.dtype(x.dtype if out_dtype is None else out_dtype)
    compute_dtype = jnp.dtype(w_prep.dtype)
    cbytes = compute_dtype.itemsize
    xbytes = jnp.dtype(x.dtype).itemsize
    obytes = out_dtype.itemsize

    cfg = _chip_config()
    Kp = Kw

    # ---- tiling (balanced, generation-aware, divides the padded weight) ----
    tn_cap = cfg["tn_cap_16b"] if cbytes <= 2 else cfg["tn_cap_f32"]
    tn = _largest_divisor_tile(Nw, tn_cap)

    # Sublane alignment for the M axis (covers a possible bf16 pre-cast of x
    # and narrow output dtypes).
    align_m = max(8, 32 // min(xbytes, cbytes), 32 // obytes)
    tm = _balanced_tile(M, cfg["tm_cap"], align_m)
    Mp = _round_up(M, tm)

    # v7x megacore: guarantee >= 2 steps along a 'parallel' axis so both
    # TensorCores get work (harmless extra grid step on single-TC v5e/v6e).
    if Nw // tn == 1 and Mp // tm == 1 and Nw >= 256:
        tn = _largest_divisor_tile(Nw, max(128, Nw // 2))
    n_tiles = Nw // tn

    # ---- reduction strategy -------------------------------------------------
    if tk is None:
        single_k = (
            Kp * tn * cbytes <= cfg["w_resident"]
            and tm * Kp * xbytes <= cfg["x_resident"]
        )
        tk_cap = cfg["tk_cap_16b"] if cbytes <= 2 else cfg["tk_cap_f32"]
        tk_eff = Kp if single_k else _largest_divisor_tile(Kp, tk_cap)
    else:
        tk_eff = _largest_divisor_tile(Kp, max(128, _round_up(int(tk), 128)))
        single_k = tk_eff >= Kp

    # single_k grid order: stream the LARGER operand once, re-read the smaller.
    n_outer = (Kp * Nw * cbytes) >= (Mp * Kp * xbytes)

    # How many times each x element is DMA'd with the chosen layout; pre-cast
    # x in the wrapper only when that repeated traffic dominates the cast cost.
    x_reread = 1 if (single_k and not n_outer) else n_tiles
    precast_x = (cbytes < xbytes) and (x_reread > 2)

    # ---- per-call x prep (cast only when profitable; zero-pad M/K if ragged) -
    xp = x.astype(compute_dtype) if precast_x else x
    if (Mp, Kp) != (M, K):
        xp = jnp.pad(xp, ((0, Mp - M), (0, Kp - K)))
    xeb = jnp.dtype(xp.dtype).itemsize

    cost = pl.CostEstimate(
        flops=2 * Mp * Kp * Nw,
        transcendentals=0,
        bytes_accessed=Mp * Kp * xeb + Kp * Nw * cbytes + Mp * Nw * obytes,
    )

    if single_k:
        vmem_need = 2 * (tm * Kp * xeb + Kp * tn * cbytes) + 2 * tm * tn * obytes
        if n_outer:
            # Weight tile fetched once per n-tile, resident across the m loop.
            grid = (n_tiles, Mp // tm)
            x_spec = pl.BlockSpec((tm, Kp), lambda j, i: (i, 0))
            w_spec = pl.BlockSpec((Kp, tn), lambda j, i: (0, j))
            o_spec = pl.BlockSpec((tm, tn), lambda j, i: (i, j))
        else:
            # Activation tile fetched once per m-tile; small weight re-read.
            grid = (Mp // tm, n_tiles)
            x_spec = pl.BlockSpec((tm, Kp), lambda i, j: (i, 0))
            w_spec = pl.BlockSpec((Kp, tn), lambda i, j: (0, j))
            o_spec = pl.BlockSpec((tm, tn), lambda i, j: (i, j))
        out = pl.pallas_call(
            _rf_fused_kernel,
            out_shape=jax.ShapeDtypeStruct((Mp, Nw), out_dtype),
            grid_spec=pltpu.PrefetchScalarGridSpec(
                num_scalar_prefetch=0,
                grid=grid,
                in_specs=[x_spec, w_spec],
                out_specs=o_spec,
            ),
            compiler_params=pltpu.CompilerParams(
                dimension_semantics=("parallel", "parallel"),
                vmem_limit_bytes=_vmem_limit(vmem_need, cfg),
            ),
            cost_estimate=cost,
        )(xp, w_prep)
    else:
        vmem_need = (
            2 * (tm * tk_eff * xeb + tk_eff * tn * cbytes)
            + 2 * tm * tn * obytes
            + tm * tn * 4
        )
        out = pl.pallas_call(
            _rf_ktiled_kernel,
            out_shape=jax.ShapeDtypeStruct((Mp, Nw), out_dtype),
            grid_spec=pltpu.PrefetchScalarGridSpec(
                num_scalar_prefetch=0,
                grid=(Mp // tm, n_tiles, Kp // tk_eff),
                in_specs=[
                    pl.BlockSpec((tm, tk_eff), lambda i, j, k: (i, k)),
                    pl.BlockSpec((tk_eff, tn), lambda i, j, k: (k, j)),
                ],
                out_specs=pl.BlockSpec((tm, tn), lambda i, j, k: (i, j)),
                scratch_shapes=[pltpu.VMEM((tm, tn), jnp.float32)],
            ),
            compiler_params=pltpu.CompilerParams(
                dimension_semantics=("parallel", "parallel", "arbitrary"),
                vmem_limit_bytes=_vmem_limit(vmem_need, cfg),
            ),
            cost_estimate=cost,
        )(xp, w_prep)

    if (Mp, Nw) != (M, N):
        out = out[:M, :N]
    return out


# --------------------------------------------------------------------------
# Self-test
# --------------------------------------------------------------------------
if __name__ == "__main__":
    key = jax.random.PRNGKey(0)
    kx, kw, kx2, kw2 = jax.random.split(key, 4)

    # Small shapes consistent with the module: x is [batch, input_shape].
    batch, input_shape, random_feature_size = 16, 256, 512

    x = jax.random.normal(kx, (batch, input_shape), dtype=jnp.float32)
    w_t = init_random_features_weight(kw, input_shape, random_feature_size)
    y_ref = jnp.maximum(x @ w_t, 0.0)

    # One-time weight prep (cast + pad hoisted out of the per-call hot path).
    w_f32 = jax.block_until_ready(prepare_random_features_weight(w_t))
    w_bf16 = jax.block_until_ready(
        prepare_random_features_weight(w_t, jnp.bfloat16)
    )

    # 1) f32 compute path (single fused grid step) -- exact.
    y = jax.block_until_ready(
        random_features(x, w_f32, n_out=random_feature_size)
    )
    assert y.shape == (batch, random_feature_size)
    assert jnp.allclose(y, y_ref, atol=1e-5, rtol=1e-5)

    # 2) bf16 compute path (MXU-native on v6e/v7x), f32 accumulation,
    #    in-kernel cast of the f32 activations.
    y_bf16 = jax.block_until_ready(
        random_features(x, w_bf16, n_out=random_feature_size,
                        out_dtype=jnp.float32)
    )
    assert jnp.allclose(y_bf16, y_ref, atol=5e-2, rtol=5e-2)

    # 3) Forced k-tiled path (VMEM f32 scratch accumulator + final ReLU/cast).
    y_kt = jax.block_until_ready(
        random_features(x, w_f32, n_out=random_feature_size, tk=128)
    )
    assert jnp.allclose(y_kt, y_ref, atol=1e-5, rtol=1e-5)

    # 4) Ragged shapes exercise the zero-padding / output-slicing path.
    x2 = jax.random.normal(kx2, (5, 100), dtype=jnp.float32)
    w2_t = init_random_features_weight(kw2, 100, 200)
    w2 = prepare_random_features_weight(w2_t)
    y2 = jax.block_until_ready(random_features(x2, w2, n_out=200))
    y2_ref = jnp.maximum(x2 @ w2_t, 0.0)
    assert y2.shape == (5, 200)
    assert jnp.allclose(y2, y2_ref, atol=1e-5, rtol=1e-5)

    print("KERNEL_OK")
</pallas_src>

<mosaic_0001>
module attributes {stable_mosaic.version = 11 : i64} {
  func.func @_rf_fused_kernel(%arg0: i32, %arg1: i32, %arg2: memref<16x256xf32, #tpu.memory_space<vmem>>, %arg3: memref<256x256xf32, #tpu.memory_space<vmem>>, %arg4: memref<16x256xf32, #tpu.memory_space<vmem>>) attributes {dimension_semantics = [#tpu.dimension_semantics<parallel>, #tpu.dimension_semantics<parallel>], iteration_bounds = array<i64: 2, 1>, scalar_prefetch = 0 : i64, scratch_operands = 0 : i64, tpu.core_type = #tpu.core_type<tc>, window_params = [{transform_indices = @transform_0, window_bounds = array<i64: 16, 256>}, {transform_indices = @transform_1, window_bounds = array<i64: 256, 256>}, {transform_indices = @transform_2, window_bounds = array<i64: 16, 256>}]} {
    %c0 = arith.constant 0 : index
    %c0_0 = arith.constant 0 : index
    %0 = vector.load %arg2[%c0, %c0_0] : memref<16x256xf32, #tpu.memory_space<vmem>>, vector<16x256xf32>
    %c0_1 = arith.constant 0 : index
    %c0_2 = arith.constant 0 : index
    %1 = vector.load %arg3[%c0_1, %c0_2] : memref<256x256xf32, #tpu.memory_space<vmem>>, vector<256x256xf32>
    %cst = arith.constant dense<0.000000e+00> : vector<16x256xf32>
    %2 = tpu.matmul %0, %1, %cst {dimension_numbers = #tpu.dot_dimension_numbers<[1], [0], [0], [1], [0, 0, 1, 1], [], []>} : vector<16x256xf32>, vector<256x256xf32>, vector<16x256xf32> -> vector<16x256xf32>
    %cst_3 = arith.constant 0.000000e+00 : f32
    %3 = vector.broadcast %cst_3 : f32 to vector<16x256xf32>
    %4 = arith.maximumf %2, %3 : vector<16x256xf32>
    %c0_4 = arith.constant 0 : index
    %c0_5 = arith.constant 0 : index
    %5 = vector.load %arg4[%c0_4, %c0_5] : memref<16x256xf32, #tpu.memory_space<vmem>>, vector<16x256xf32>
    tpu.vector_store %arg4[%c0_4, %c0_5], %4 {strides = array<i32>} : memref<16x256xf32, #tpu.memory_space<vmem>>, vector<16x256xf32>,
    return
  }
  func.func @transform_0(%arg0: i32, %arg1: i32) -> (i32, i32) {
    %c0_i32 = arith.constant 0 : i32
    %c0_i32_0 = arith.constant 0 : i32
    return %arg1, %c0_i32 : i32, i32
  }
  func.func @transform_1(%arg0: i32, %arg1: i32) -> (i32, i32) {
    %c0_i32 = arith.constant 0 : i32
    %c0_i32_0 = arith.constant 0 : i32
    return %c0_i32, %arg0 : i32, i32
  }
  func.func @transform_2(%arg0: i32, %arg1: i32) -> (i32, i32) {
    %c0_i32 = arith.constant 0 : i32
    return %arg1, %arg0 : i32, i32
  }
}

</mosaic_0001>

<llo_original>
// kernel: random_features.1
$region0: #{random_features.1}
  #allocation0 [shape = 'u32[]', space=smem, size = 0x4, offset = 0x4, fixed_abs, tag = 'smem constant byte address 0x4 - core index']
  #allocation1 [shape = 'u32[144,128]{1,0:T(1,128)}', space=vmem, size = 0x12000, scoped, tag = 'internal scratch']
  %s0 = inlined_call_operand.hbm [shape: f32[16,256], index: 0, kind: input, shape index: {}]
  %s1 = inlined_call_operand.hbm [shape: f32[256,512], index: 1, kind: input, shape index: {}]
  %s2 = inlined_call_operand.hbm [shape: f32[16,512], index: 2, kind: output, shape index: {}]
  %s3 = sld [smem:[#allocation0]]
  $region49: #{random_features.1} parent=0
    _
  %s5 = ssub.s32 1, %s3
  %s6 = scalar_select 0, %s5, %s3
  $region1: #{random_features.1} parent=0
    #allocation2 [shape = 'u8[16384]{0}', space=vmem, size = 0x4000, scoped, tag = 'input window, operand 0, single buffered']
    #allocation3 [shape = 's32[2]{0}', space=sflag, size = 0x8, scoped, tag = 'scoped memory for random_features.1']
    #allocation4 [shape = 's32[2]{0}', space=sflag, size = 0x8, scoped, tag = 'scoped memory for random_features.1']
    #allocation5 [shape = 'u8[524288]{0}', space=vmem, size = 0x80000, scoped, tag = 'input window, operand 1']
    #allocation6 [shape = 's32[2]{0}', space=sflag, size = 0x8, scoped, tag = 'scoped memory for random_features.1']
    #allocation7 [shape = 'u8[32768]{0}', space=vmem, size = 0x8000, scoped, tag = 'output window, operand 0']
    %7 = vsyncpa [#allocation3], 0
    %8 = vsyncpa [#allocation6], 0
    %s9 = scalar_lea.sflag [#allocation6], 1
    %10 = vsyncpa %s9, 0
    %11 = vsyncpa [#allocation4], 0
    %s12 = scalar_lea.sflag [#allocation4], 1
    %13 = vsyncpa %s12, 0
    loop: start=0, step=1, limit=4
    $region2: #{random_features.1} parent=1 // loop_pre_header
      _
    $region3: #{random_features.1} parent=1 // loop_header
      %s15 = sphi 0, %s19
      %p16 = scmp.ge.s32.totalorder %s15, 4
      %s22 = sphi 0, %s34
      %s23 = sphi 0, %s30
      %s24 = sphi 0, %s22
      %s25 = sphi 0, %s23
      %s26 = sphi 0, %s24
      %s27 = sphi 0, %s25
      %s37 = sphi 0, %s39
      %s40 = sphi 0, %s37
      %s41 = sphi 0, %s40
      %s57 = sphi 0, %s41
      %s63 = sphi 0, %s65
      %s66 = sphi 0, %s63
      %s67 = sphi 0, %s66
      %s83 = sphi 0, %s67
      %s91 = sphi 0, %s93
      %s94 = sphi 0, %s91
      %s95 = sphi 0, %s94
      %s111 = sphi 0, %s95
    $region4: #{random_features.1} parent=1 // loop_header_branch
      %18 = sbr.rel (%p16) target = $region8
    $region5: #{random_features.1} parent=1 // loop_body
      %s20 = ssub.s32 %s15, 1
      %s21 = ssub.s32 %s15, 2
      %s28 = sadd.s32 1, %s23
      %p29 = scmp.ge.s32.totalorder %s28, 1
      %s30 = scalar_select %p29, 0, %s28
      %s31 = sadd.s32 1, %s22
      %s32 = scalar_select %p29, %s31, %s22
      %p33 = scmp.ge.s32.totalorder %s32, 2
      %s34 = scalar_select %p33, 0, %s32
      %s35 = ssub.s32 %s23, %s30
      %p36 = scmp.eq.s32.totalorder %s35, 0
      %s38 = sadd.s32 %s37, 1
      %s39 = scalar_select %p36, %s37, %s38
      %p42 = pneg %p36
      %p43 = scmp.eq.s32.totalorder %s15, 1
      %p44 = por %p42, %p43
      %p45 = scmp.ne.s32.totalorder %s37, %s40
      %p46 = scmp.eq.s32.totalorder %s15, 0
      %p47 = por %p45, %p46
      %p48 = scmp.ne.s32.totalorder %s37, %s40
      %p49 = scmp.eq.s32.totalorder %s20, 1
      %p50 = por %p48, %p49
      %p51 = scmp.ne.s32.totalorder %s40, %s41
      %p52 = scmp.eq.s32.totalorder %s20, 0
      %p53 = por %p51, %p52
      %p54 = scmp.ne.s32.totalorder %s40, %s41
      %p55 = scmp.eq.s32.totalorder %s21, 1
      %p56 = por %p54, %p55
      %p58 = scmp.ne.s32.totalorder %s41, %s57
      %p59 = scmp.eq.s32.totalorder %s21, 0
      %p60 = por %p58, %p59
      %s61 = ssub.s32 %s22, %s34
      %p62 = scmp.eq.s32.totalorder %s61, 0
      %s64 = sadd.s32 %s63, 1
      %s65 = scalar_select %p62, %s63, %s64
      %p68 = pneg %p62
      %p69 = scmp.eq.s32.totalorder %s15, 1
      %p70 = por %p68, %p69
      %p71 = scmp.ne.s32.totalorder %s63, %s66
      %p72 = scmp.eq.s32.totalorder %s15, 0
      %p73 = por %p71, %p72
      %p74 = scmp.ne.s32.totalorder %s63, %s66
      %p75 = scmp.eq.s32.totalorder %s20, 1
      %p76 = por %p74, %p75
      %p77 = scmp.ne.s32.totalorder %s66, %s67
      %p78 = scmp.eq.s32.totalorder %s20, 0
      %p79 = por %p77, %p78
      %p80 = scmp.ne.s32.totalorder %s66, %s67
      %p81 = scmp.eq.s32.totalorder %s21, 1
      %p82 = por %p80, %p81
      %p84 = scmp.ne.s32.totalorder %s67, %s83
      %p85 = scmp.eq.s32.totalorder %s21, 0
      %p86 = por %p84, %p85
      %s87 = ssub.s32 %s23, %s30
      %s88 = ssub.s32 %s22, %s34
      %s89 = sor.u32 %s87, %s88
      %p90 = scmp.eq.s32.totalorder %s89, 0
      %s92 = sadd.s32 %s91, 1
      %s93 = scalar_select %p90, %s91, %s92
      %p96 = pneg %p90
      %p97 = scmp.eq.s32.totalorder %s15, 1
      %p98 = por %p96, %p97
      %p99 = scmp.ne.s32.totalorder %s91, %s94
      %p100 = scmp.eq.s32.totalorder %s15, 0
      %p101 = por %p99, %p100
      %p102 = scmp.ne.s32.totalorder %s91, %s94
      %p103 = scmp.eq.s32.totalorder %s20, 1
      %p104 = por %p102, %p103
      %p105 = scmp.ne.s32.totalorder %s94, %s95
      %p106 = scmp.eq.s32.totalorder %s20, 0
      %p107 = por %p105, %p106
      %p108 = scmp.ne.s32.totalorder %s94, %s95
      %p109 = scmp.eq.s32.totalorder %s21, 1
      %p110 = por %p108, %p109
      %p112 = scmp.ne.s32.totalorder %s95, %s111
      %p113 = scmp.eq.s32.totalorder %s21, 0
      %p114 = por %p112, %p113
      %p115 = scmp.le.s32.totalorder 1, %s15
      %p116 = scmp.lt.s32.totalorder %s15, 3
      %p117 = pnand %p115, %p116
      %p118 = pneg %p117
      // Predicated region
      $region9: #{random_features.1} parent=5 // pred_check
        _
      $region10: #{random_features.1} parent=5 // pred_check_branch
        %120 = sbr.rel (%p117) target = $region12
      $region11: #{random_features.1} parent=5 // pred_region
        %s121 = ssub.s32 %s15, 1
        // Predicated region
        $region13: #{random_features.1} parent=11 // pred_check
          %p122 = pneg %p53
        $region14: #{random_features.1} parent=11 // pred_check_branch
          %124 = sbr.rel (%p122) target = $region16
        $region15: #{random_features.1} parent=11 // pred_region
          %s125 = smul.u32 2, %s25
          %s127 = ssub.s32 512, 512
          %128 = vsyncadd [#allocation3], %s127
          %s129 = smul.addr %s125, 2
          %s130 = smul.addr %s129, 128
          %s131 = scalar_lea.hbm %s0, %s130
          %s132 = sshll.u32 [#allocation2], 4
          %s133 = int_to_ptr.vmem [resolvable:$true] %s132
          %138 = dma.hbm_to_vmem [thread:$0]  %s131, 512, %s133, [#allocation3], 256, 256, 16
        $region16: #{random_features.1} parent=11 // pred_fallthru
          _
      $region12: #{random_features.1} parent=5 // pred_fallthru
        _
      %p139 = scmp.lt.s32.totalorder %s15, 2
      // Predicated region
      $region17: #{random_features.1} parent=5 // pred_check
        %p140 = pneg %p139
      $region18: #{random_features.1} parent=5 // pred_check_branch
        %142 = sbr.rel (%p140) target = $region20
      $region19: #{random_features.1} parent=5 // pred_region
        // Predicated region
        $region21: #{random_features.1} parent=19 // pred_check
          %p143 = pneg %p73
        $region22: #{random_features.1} parent=19 // pred_check_branch
          %145 = sbr.rel (%p143) target = $region24
        $region23: #{random_features.1} parent=19 // pred_region
          %s146 = sand.u32 %s63, 1
          %s147 = scalar_lea.sflag [#allocation6], %s146
          %s148 = sand.u32 %s63, 1
          %s149 = smul.addr %s148, 512
          %s150 = scalar_lea.vmem [#allocation5], %s149
          %s151 = smul.u32 2, %s22
          %s153 = ssub.s32 8192, 8192
          %154 = vsyncadd %s147, %s153
          %s155 = smul.addr %s151, 128
          %s156 = scalar_lea.hbm %s1, %s155
          %s157 = sshll.u32 %s150, 4
          %s158 = int_to_ptr.vmem [resolvable:$true] %s157
          %163 = dma.hbm_to_vmem [thread:$0]  %s156, 8192, %s158, %s147, 512, 256, 16
        $region24: #{random_features.1} parent=19 // pred_fallthru
          _
      $region20: #{random_features.1} parent=5 // pred_fallthru
        _
      %p164 = scmp.le.s32.totalorder 1, %s15
      %p165 = scmp.lt.s32.totalorder %s15, 3
      %p166 = pnand %p164, %p165
      %p167 = pneg %p166
      // Predicated region
      $region25: #{random_features.1} parent=5 // pred_check
        _
      $region26: #{random_features.1} parent=5 // pred_check_branch
        %169 = sbr.rel (%p166) target = $region28
      $region27: #{random_features.1} parent=5 // pred_region
        %s170 = ssub.s32 %s15, 1
        // Predicated region
        $region29: #{random_features.1} parent=27 // pred_check
          %p171 = pneg %p53
        $region30: #{random_features.1} parent=27 // pred_check_branch
          %173 = sbr.rel (%p171) target = $region32
        $region31: #{random_features.1} parent=27 // pred_region
          %174 = dma.done [#allocation3], 512
        $region32: #{random_features.1} parent=27 // pred_fallthru
          _
        %s175 = sand.u32 %s66, 1
        %s176 = scalar_lea.sflag [#allocation6], %s175
        %s177 = sand.u32 %s66, 1
        %s178 = smul.addr %s177, 512
        %s179 = scalar_lea.vmem [#allocation5], %s178
        // Predicated region
        $region33: #{random_features.1} parent=27 // pred_check
          %p180 = pneg %p79
        $region34: #{random_features.1} parent=27 // pred_check_branch
          %182 = sbr.rel (%p180) target = $region36
        $region35: #{random_features.1} parent=27 // pred_region
          %183 = dma.done %s176, 8192
        $region36: #{random_features.1} parent=27 // pred_fallthru
          _
        %p184 = pneg %p53
        %p185 = pneg %p50
        %s186 = sand.u32 %s66, 1
        %s187 = scalar_lea.sflag [#allocation6], %s186
        %s188 = sand.u32 %s66, 1
        %s189 = smul.addr %s188, 512
        %s190 = scalar_lea.vmem [#allocation5], %s189
        %p191 = pneg %p79
        %p192 = pneg %p76
        %p193 = pneg %p107
        %p194 = pneg %p104
        %s195 = sand.u32 %s94, 1
        %s196 = scalar_lea.sflag [#allocation4], %s195
        %s197 = sand.u32 %s94, 1
        %s198 = smul.addr %s197, 32
        %s199 = scalar_lea.vmem [#allocation7], %s198
        %s200 = smul.u32 2, %s25
        %s201 = smul.u32 2, %s24
        %s202 = smul.u32 2, %s25
        %s203 = smul.u32 2, %s24
        %v204 = vld [vmem:[#allocation2] sm:$0xff]
        %v205 = vld [vmem:[#allocation2 + $0x8] sm:$0xff]
        %v206 = vld [vmem:[#allocation2 + $0x10] sm:$0xff]
        %v207 = vld [vmem:[#allocation2 + $0x18] sm:$0xff]
        %v208 = vld [vmem:[%s179] sm:$0xff]
        %v209 = vld [vmem:[%s179 + $0x8] sm:$0xff]
        %v210 = vld [vmem:[%s179 + $0x10] sm:$0xff]
        %v211 = vld [vmem:[%s179 + $0x18] sm:$0xff]
        %v212 = vld [vmem:[%s179 + $0x20] sm:$0xff]
        %v213 = vld [vmem:[%s179 + $0x28] sm:$0xff]
        %v214 = vld [vmem:[%s179 + $0x30] sm:$0xff]
        %v215 = vld [vmem:[%s179 + $0x38] sm:$0xff]
        %v216 = vld [vmem:[%s179 + $0x40] sm:$0xff]
        %v217 = vld [vmem:[%s179 + $0x48] sm:$0xff]
        %v218 = vld [vmem:[%s179 + $0x50] sm:$0xff]
        %v219 = vld [vmem:[%s179 + $0x58] sm:$0xff]
        %v220 = vld [vmem:[%s179 + $0x60] sm:$0xff]
        %v221 = vld [vmem:[%s179 + $0x68] sm:$0xff]
        %v222 = vld [vmem:[%s179 + $0x70] sm:$0xff]
        %v223 = vld [vmem:[%s179 + $0x78] sm:$0xff]
        %v224 = vld [vmem:[%s179 + $0x80] sm:$0xff]
        %v225 = vld [vmem:[%s179 + $0x88] sm:$0xff]
        %v226 = vld [vmem:[%s179 + $0x90] sm:$0xff]
        %v227 = vld [vmem:[%s179 + $0x98] sm:$0xff]
        %v228 = vld [vmem:[%s179 + $0xa0] sm:$0xff]
        %v229 = vld [vmem:[%s179 + $0xa8] sm:$0xff]
        %v230 = vld [vmem:[%s179 + $0xb0] sm:$0xff]
        %v231 = vld [vmem:[%s179 + $0xb8] sm:$0xff]
        %v232 = vld [vmem:[%s179 + $0xc0] sm:$0xff]
        %v233 = vld [vmem:[%s179 + $0xc8] sm:$0xff]
        %v234 = vld [vmem:[%s179 + $0xd0] sm:$0xff]
        %v235 = vld [vmem:[%s179 + $0xd8] sm:$0xff]
        %v236 = vld [vmem:[%s179 + $0xe0] sm:$0xff]
        %v237 = vld [vmem:[%s179 + $0xe8] sm:$0xff]
        %v238 = vld [vmem:[%s179 + $0xf0] sm:$0xff]
        %v239 = vld [vmem:[%s179 + $0xf8] sm:$0xff]
        %v240 = vld [vmem:[%s179 + $0x100] sm:$0xff]
        %v241 = vld [vmem:[%s179 + $0x108] sm:$0xff]
        %v242 = vld [vmem:[%s179 + $0x110] sm:$0xff]
        %v243 = vld [vmem:[%s179 + $0x118] sm:$0xff]
        %v244 = vld [vmem:[%s179 + $0x120] sm:$0xff]
        %v245 = vld [vmem:[%s179 + $0x128] sm:$0xff]
        %v246 = vld [vmem:[%s179 + $0x130] sm:$0xff]
        %v247 = vld [vmem:[%s179 + $0x138] sm:$0xff]
        %v248 = vld [vmem:[%s179 + $0x140] sm:$0xff]
        %v249 = vld [vmem:[%s179 + $0x148] sm:$0xff]
        %v250 = vld [vmem:[%s179 + $0x150] sm:$0xff]
        %v251 = vld [vmem:[%s179 + $0x158] sm:$0xff]
        %v252 = vld [vmem:[%s179 + $0x160] sm:$0xff]
        %v253 = vld [vmem:[%s179 + $0x168] sm:$0xff]
        %v254 = vld [vmem:[%s179 + $0x170] sm:$0xff]
        %v255 = vld [vmem:[%s179 + $0x178] sm:$0xff]
        %v256 = vld [vmem:[%s179 + $0x180] sm:$0xff]
        %v257 = vld [vmem:[%s179 + $0x188] sm:$0xff]
        %v258 = vld [vmem:[%s179 + $0x190] sm:$0xff]
        %v259 = vld [vmem:[%s179 + $0x198] sm:$0xff]
        %v260 = vld [vmem:[%s179 + $0x1a0] sm:$0xff]
        %v261 = vld [vmem:[%s179 + $0x1a8] sm:$0xff]
        %v262 = vld [vmem:[%s179 + $0x1b0] sm:$0xff]
        %v263 = vld [vmem:[%s179 + $0x1b8] sm:$0xff]
        %v264 = vld [vmem:[%s179 + $0x1c0] sm:$0xff]
        %v265 = vld [vmem:[%s179 + $0x1c8] sm:$0xff]
        %v266 = vld [vmem:[%s179 + $0x1d0] sm:$0xff]
        %v267 = vld [vmem:[%s179 + $0x1d8] sm:$0xff]
        %v268 = vld [vmem:[%s179 + $0x1e0] sm:$0xff]
        %v269 = vld [vmem:[%s179 + $0x1e8] sm:$0xff]
        %v270 = vld [vmem:[%s179 + $0x1f0] sm:$0xff]
        %v271 = vld [vmem:[%s179 + $0x1f8] sm:$0xff]
        %272 = vmatprep.subr.mxu0 %v209
        %273 = vmatpush1.msra.mxu0 %v208
        %274 = vmatprep.subr.mxu0 %v211
        %275 = vmatpush1.msra.mxu0 %v210
        %276 = vmatprep.subr.mxu0 %v213
        %277 = vmatpush1.msra.mxu0 %v212
        %278 = vmatprep.subr.mxu0 %v215
        %279 = vmatpush1.msra.mxu0 %v214
        %280 = vmatprep.subr.mxu0 %v217
        %281 = vmatpush1.msra.mxu0 %v216
        %282 = vmatprep.subr.mxu0 %v219
        %283 = vmatpush1.msra.mxu0 %v218
        %284 = vmatprep.subr.mxu0 %v221
        %285 = vmatpush1.msra.mxu0 %v220
        %286 = vmatprep.subr.mxu0 %v223
        %287 = vmatpush1.msra.mxu0 %v222
        %288 = vmatprep.subr.mxu0 %v225
        %289 = vmatpush1.msra.mxu0 %v224
        %290 = vmatprep.subr.mxu0 %v227
        %291 = vmatpush1.msra.mxu0 %v226
        %292 = vmatprep.subr.mxu0 %v229
        %293 = vmatpush1.msra.mxu0 %v228
        %294 = vmatprep.subr.mxu0 %v231
        %295 = vmatpush1.msra.mxu0 %v230
        %296 = vmatprep.subr.mxu0 %v233
        %297 = vmatpush1.msra.mxu0 %v232
        %298 = vmatprep.subr.mxu0 %v235
        %299 = vmatpush1.msra.mxu0 %v234
        %300 = vmatprep.subr.mxu0 %v237
        %301 = vmatpush1.msra.mxu0 %v236
        %302 = vmatprep.subr.mxu0 %v239
        %303 = vmatpush1.msra.mxu0 %v238
        %304 = vmatprep.subr.mxu0 %v241
        %305 = vmatpush1.msra.mxu0 %v240
        %306 = vmatprep.subr.mxu0 %v243
        %307 = vmatpush1.msra.mxu0 %v242
        %308 = vmatprep.subr.mxu0 %v245
        %309 = vmatpush1.msra.mxu0 %v244
        %310 = vmatprep.subr.mxu0 %v247
        %311 = vmatpush1.msra.mxu0 %v246
        %312 = vmatprep.subr.mxu0 %v249
        %313 = vmatpush1.msra.mxu0 %v248
        %314 = vmatprep.subr.mxu0 %v251
        %315 = vmatpush1.msra.mxu0 %v250
        %316 = vmatprep.subr.mxu0 %v253
        %317 = vmatpush1.msra.mxu0 %v252
        %318 = vmatprep.subr.mxu0 %v255
        %319 = vmatpush1.msra.mxu0 %v254
        %320 = vmatprep.subr.mxu0 %v257
        %321 = vmatpush1.msra.mxu0 %v256
        %322 = vmatprep.subr.mxu0 %v259
        %323 = vmatpush1.msra.mxu0 %v258
        %324 = vmatprep.subr.mxu0 %v261
        %325 = vmatpush1.msra.mxu0 %v260
        %326 = vmatprep.subr.mxu0 %v263
        %327 = vmatpush1.msra.mxu0 %v262
        %328 = vmatprep.subr.mxu0 %v265
        %329 = vmatpush1.msra.mxu0 %v264
        %330 = vmatprep.subr.mxu0 %v267
        %331 = vmatpush1.msra.mxu0 %v266
        %332 = vmatprep.subr.mxu0 %v269
        %333 = vmatpush1.msra.mxu0 %v268
        %334 = vmatprep.subr.mxu0 %v271
        %335 = vmatpush1.msra.mxu0 %v270
        %336 = vmatprep.mubr.f32.mxu0 %v205
        %337 = vmatmul.mubr.f32.gmra.mrb[0].mxu0 %v204
        %v338 = vpop.f32.mrb[0].mxu0
        %v339 = vadd.f32 0.0, %v338
        %v340 = vpop.f32.mrb[0].mxu0
        %v341 = vadd.f32 0.0, %v340
        %342 = vmatprep.mubr.f32.mxu0 %v207
        %343 = vmatmul.mubr.f32.gmra.mrb[0].mxu0 %v206
        %v344 = vpop.f32.mrb[0].mxu0
        %v345 = vadd.f32 0.0, %v344
        %v346 = vpop.f32.mrb[0].mxu0
        %v347 = vadd.f32 0.0, %v346
        %348 = vdwg.mxu0
        %v349 = vmax.f32 %v339, 0.0
        %v350 = vmax.f32 %v341, 0.0
        %v351 = vmax.f32 %v345, 0.0
        %v352 = vmax.f32 %v347, 0.0
        %353 = vst [vmem:[%s199] sm:$0xff] %v349
        %354 = vst [vmem:[%s199 + $0x8] sm:$0xff] %v350
        %355 = vst [vmem:[%s199 + $0x10] sm:$0xff] %v351
        %356 = vst [vmem:[%s199 + $0x18] sm:$0xff] %v352
        %s357 = sand.u32 %s94, 1
        %s358 = scalar_lea.sflag [#allocation4], %s357
        %s359 = sand.u32 %s94, 1
        %s360 = smul.addr %s359, 32
        %s361 = scalar_lea.vmem [#allocation7], %s360
        // Predicated region
        $region37: #{random_features.1} parent=27 // pred_check
          %p362 = pneg %p104
        $region38: #{random_features.1} parent=27 // pred_check_branch
          %364 = sbr.rel (%p362) target = $region40
        $region39: #{random_features.1} parent=27 // pred_region
          %s365 = smul.u32 2, %s25
          %s366 = smul.u32 2, %s24
          %s368 = ssub.s32 512, 512
          %369 = vsyncadd %s358, %s368
          %s370 = smul.addr %s365, 4
          %s371 = sadd.s32 %s366, %s370
          %s372 = smul.addr %s371, 128
          %s373 = scalar_lea.hbm %s2, %s372
          %s374 = sshll.u32 %s361, 4
          %s375 = int_to_ptr.vmem [resolvable:$true] %s374
          %380 = dma.vmem_to_hbm [thread:$0]  %s375, 512, %s373, %s358, 256, 512, 16
        $region40: #{random_features.1} parent=27 // pred_fallthru
          _
      $region28: #{random_features.1} parent=5 // pred_fallthru
        _
      %p381 = scmp.le.s32.totalorder 2, %s15
      // Predicated region
      $region41: #{random_features.1} parent=5 // pred_check
        %p382 = pneg %p381
      $region42: #{random_features.1} parent=5 // pred_check_branch
        %384 = sbr.rel (%p382) target = $region44
      $region43: #{random_features.1} parent=5 // pred_region
        %s385 = ssub.s32 %s15, 2
        // Predicated region
        $region45: #{random_features.1} parent=43 // pred_check
          %p386 = pneg %p110
        $region46: #{random_features.1} parent=43 // pred_check_branch
          %388 = sbr.rel (%p386) target = $region48
        $region47: #{random_features.1} parent=43 // pred_region
          %s389 = sand.u32 %s95, 1
          %s390 = scalar_lea.sflag [#allocation4], %s389
          %s391 = sand.u32 %s95, 1
          %s392 = smul.addr %s391, 32
          %s393 = scalar_lea.vmem [#allocation7], %s392
          %394 = dma.done %s390, 512
        $region48: #{random_features.1} parent=43 // pred_fallthru
          _
      $region44: #{random_features.1} parent=5 // pred_fallthru
        _
    $region6: #{random_features.1} parent=1 // loop_footer
      %s19 = sadd.s32 1, %s15
    $region7: #{random_features.1} parent=1 // loop_footer_branch
      %14 = sbr.rel target = $region3
    $region8: #{random_features.1} parent=1 // loop_exit
      _
    %395 = vsyncpa [#allocation3], 1
    %s396 = scalar_lea.sflag [#allocation3], 1
    %397 = vsyncpa %s396, 1
    %398 = vsyncpa [#allocation6], 1
    %s399 = scalar_lea.sflag [#allocation6], 1
    %400 = vsyncpa %s399, 1
    %401 = vsyncpa [#allocation4], 1
    %s402 = scalar_lea.sflag [#allocation4], 1
    %403 = vsyncpa %s402, 1

</llo_original>
